<compile_context>
chip_gen: v5e
topology: v5e:2x2
jax: 0.10.0
libtpu: 0.0.40
codegen_flags: <defaults>
</compile_context>

<pallas_src>
from functools import partial

import jax
import jax.numpy as jnp
from jax import lax
from jax.experimental import pallas as pl
from jax.experimental.pallas import tpu as pltpu


# --------------------------------------------------------------------------
# Kernel
# --------------------------------------------------------------------------
def _combined_kernel(a_ref, p_ref, o_ref):
    """Fused backbone conv3x3 (im2col matmul) + ReLU + 1x1 head conv.

    a_ref : (Bblk, 9*Cin+1, H*W) f32  im2col patches with a trailing ones row
            (pixels on the lane axis; the ones row carries both conv biases).
    p_ref : (Cmid+1+Cout, 9*Cin+1) f32  packed params:
              rows [0, Cmid)        : backbone weight | backbone bias column
              row  Cmid             : passthrough row [0 ... 0 | 1]
              rows [Cmid+1, +Cout)  : head weight^T | head bias, zero padded
    o_ref : (Bblk, Cout, H*W) f32  lane-dense output (unmasked vst).
    """
    bblk = a_ref.shape[0]
    cout = o_ref.shape[1]
    cmid1 = p_ref.shape[0] - cout            # Cmid + 1 (ones passthrough row)

    p = p_ref[...]
    wb = p[:cmid1, :]                        # (Cmid+1, 9*Cin+1)
    wh = p[cmid1:cmid1 + cout, :cmid1]       # (Cout, Cmid+1)

    for b in range(bblk):                    # static unroll (bblk in {1, 2})
        # Backbone 3x3 conv + bias == one MXU matmul over the 9*Cin+1 axis.
        feat = jnp.dot(wb, a_ref[b], preferred_element_type=jnp.float32)
        # ReLU (the passthrough row stays at 1.0 and feeds the head bias).
        feat = jnp.maximum(feat, 0.0)
        # 1x1 head conv + bias == second MXU matmul; output is already in the
        # lane-dense (Cout, H*W) store layout.
        o_ref[b] = jnp.dot(wh, feat, preferred_element_type=jnp.float32)


# --------------------------------------------------------------------------
# Wrapper-side layout glue (no transposes)
# --------------------------------------------------------------------------
def _im2col_aug(x_nchw):
    """(B, Cin, H, W) -> (B, 9*Cin+1, H*W), channel-major taps + ones row."""
    B, Cin, H, W = x_nchw.shape
    xp = jnp.pad(x_nchw, ((0, 0), (0, 0), (1, 1), (1, 1)))   # (B,Cin,H+2,W+2)
    taps = [xp[:, :, ky:ky + H, kx:kx + W].reshape(B, Cin, H * W)
            for ky in range(3) for kx in range(3)]           # (ky,kx,cin) order
    taps.append(jnp.ones((B, 1, H * W), x_nchw.dtype))       # bias lane
    return jnp.concatenate(taps, axis=1).astype(jnp.float32)  # (B, 9Cin+1, HW)


def pack_params(params):
    """One-time repack of all weights/biases into a single kernel operand."""
    wb = params["w_backbone"].astype(jnp.float32)             # (3,3,Cin,Cmid)
    bb = params["b_backbone"].astype(jnp.float32).reshape(-1)  # (Cmid,)
    wh = params["w_person"].astype(jnp.float32)                # (Cmid, Cout)
    bh = params["b_person"].astype(jnp.float32).reshape(-1)    # (Cout,)

    kh, kw, cin, cmid = wb.shape
    _, cout = wh.shape
    k9 = kh * kw * cin

    wb_t = wb.reshape(k9, cmid).T                              # (Cmid, K9)
    top = jnp.concatenate([wb_t, bb[:, None]], axis=1)         # (Cmid, K9+1)
    passthru = jnp.zeros((1, k9 + 1), jnp.float32).at[0, k9].set(1.0)
    head = jnp.concatenate([wh.T, bh[:, None]], axis=1)        # (Cout, Cmid+1)
    head = jnp.pad(head, ((0, 0), (0, k9 - cmid)))             # (Cout, K9+1)
    return jnp.concatenate([top, passthru, head], axis=0)      # (Cmid+1+Cout, K9+1)


def _default_splits(batch):
    """2-way batch split only on multi-TensorCore chips (v7x); else 1 step."""
    try:
        kind = jax.devices()[0].device_kind.lower()
    except Exception:
        return 1
    n_tc = 2 if ("v7" in kind or "7x" in kind) else 1
    return n_tc if (n_tc > 1 and batch % n_tc == 0) else 1


# --------------------------------------------------------------------------
# Forward pass (current_task == 'person_detection', the module default)
# --------------------------------------------------------------------------
@partial(jax.jit, static_argnames=("cmid", "cout", "splits"))
def combined_model_forward(x_nchw, packed_params, *, cmid, cout, splits=1):
    """x_nchw: (B, Cin, H, W) f32 -> (B, Cout, H, W) f32 (NCHW, torch layout)."""
    B, Cin, H, W = x_nchw.shape
    HW = H * W
    K9 = 9 * Cin
    assert packed_params.shape == (cmid + 1 + cout, K9 + 1)
    assert B % splits == 0
    bblk = B // splits

    a = _im2col_aug(x_nchw)                                   # (B, K9+1, HW)

    out = pl.pallas_call(
        _combined_kernel,
        out_shape=jax.ShapeDtypeStruct((B, cout, HW), jnp.float32),
        grid_spec=pltpu.PrefetchScalarGridSpec(
            num_scalar_prefetch=0,
            grid=(splits,),
            in_specs=[
                pl.BlockSpec((bblk, K9 + 1, HW), lambda i: (i, 0, 0)),
                pl.BlockSpec((cmid + 1 + cout, K9 + 1), lambda i: (0, 0)),
            ],
            out_specs=pl.BlockSpec((bblk, cout, HW), lambda i: (i, 0, 0)),
        ),
        compiler_params=pltpu.CompilerParams(
            dimension_semantics=("parallel",)),   # v7x: one block per TC
    )(a, packed_params)

    # Output is already channel-major; only a free reshape to NCHW is needed.
    return out.reshape(B, cout, H, W)


# --------------------------------------------------------------------------
# Synthetic parameters + pure-JAX reference
# --------------------------------------------------------------------------
def init_params(key, cin=4, cmid=8, cout=8):
    """Deterministic synthetic parameters (shapes implied by the module)."""
    k1, k2, k3, k4 = jax.random.split(key, 4)
    return {
        # backbone: Conv2d(cin, cmid, 3, padding=1) stored as (kh, kw, cin, cmid)
        "w_backbone": jax.random.normal(k1, (3, 3, cin, cmid), jnp.float32) * 0.1,
        "b_backbone": jax.random.normal(k2, (1, cmid), jnp.float32) * 0.1,
        # yolo_person head: Conv2d(cmid, cout, 1) stored as (cmid, cout)
        "w_person": jax.random.normal(k3, (cmid, cout), jnp.float32) * 0.1,
        "b_person": jax.random.normal(k4, (1, cout), jnp.float32) * 0.1,
        # TODO(synk): yolo_face / ada_face / vit_pose heads follow the same
        # pattern and would be selected by `current_task`; only the default
        # task ('person_detection') head is materialized here.
    }


def _reference(x_nchw, params):
    """Pure-JAX f32 reference (matches the torch f32 forward)."""
    wb = params["w_backbone"]
    wh = params["w_person"]
    bb = params["b_backbone"].reshape(-1)
    bh = params["b_person"].reshape(-1)

    x = jnp.transpose(x_nchw, (0, 2, 3, 1))                   # NHWC
    feat = lax.conv_general_dilated(
        x, wb, window_strides=(1, 1), padding="SAME",
        dimension_numbers=("NHWC", "HWIO", "NHWC"),
        precision=lax.Precision.HIGHEST)
    feat = jnp.maximum(feat + bb, 0.0)
    out = jnp.einsum("bhwc,cd->bhwd", feat, wh,
                     precision=lax.Precision.HIGHEST) + bh
    return jnp.transpose(out, (0, 3, 1, 2))


if __name__ == "__main__":
    key = jax.random.PRNGKey(0)
    kx, kp = jax.random.split(key)

    B, Cin, H, W = 2, 4, 16, 16
    CMID, COUT = 8, 8
    x = jax.random.normal(kx, (B, Cin, H, W), jnp.float32)
    params = init_params(kp, cin=Cin, cmid=CMID, cout=COUT)

    packed = pack_params(params)            # one-time weight repack
    splits = _default_splits(B)             # 2 on v7x (2 TCs), else 1

    out = combined_model_forward(x, packed, cmid=CMID, cout=COUT, splits=splits)
    out = jax.block_until_ready(out)

    ref = _reference(x, params)
    assert out.shape == (B, COUT, H, W), out.shape
    max_err = float(jnp.max(jnp.abs(out - ref)))
    assert jnp.allclose(out, ref, atol=3e-3, rtol=3e-3), f"mismatch: {max_err}"

    print("KERNEL_OK")
</pallas_src>

<mosaic_0001>
module attributes {stable_mosaic.version = 11 : i64} {
  func.func @_combined_kernel(%arg0: i32, %arg1: memref<2x37x256xf32, #tpu.memory_space<vmem>>, %arg2: memref<17x37xf32, #tpu.memory_space<vmem>>, %arg3: memref<2x8x256xf32, #tpu.memory_space<vmem>>) attributes {dimension_semantics = [#tpu.dimension_semantics<parallel>], iteration_bounds = array<i64: 1>, scalar_prefetch = 0 : i64, scratch_operands = 0 : i64, tpu.core_type = #tpu.core_type<tc>, window_params = [{transform_indices = @transform_0, window_bounds = array<i64: 2, 37, 256>}, {pipeline_mode = #tpu.pipeline_mode<synchronous>, transform_indices = @transform_1, window_bounds = array<i64: 17, 37>}, {transform_indices = @transform_2, window_bounds = array<i64: 2, 8, 256>}]} {
    %c0 = arith.constant 0 : index
    %c0_0 = arith.constant 0 : index
    %0 = vector.load %arg2[%c0, %c0_0] : memref<17x37xf32, #tpu.memory_space<vmem>>, vector<17x37xf32>
    %1 = vector.extract_strided_slice %0 {offsets = [0, 0], sizes = [9, 37], strides = [1, 1]} : vector<17x37xf32> to vector<9x37xf32>
    %2 = vector.extract_strided_slice %0 {offsets = [9, 0], sizes = [8, 9], strides = [1, 1]} : vector<17x37xf32> to vector<8x9xf32>
    %c0_1 = arith.constant 0 : index
    %c0_2 = arith.constant 0 : index
    %c0_3 = arith.constant 0 : index
    %3 = vector.load %arg1[%c0_1, %c0_2, %c0_3] : memref<2x37x256xf32, #tpu.memory_space<vmem>>, vector<1x37x256xf32>
    %4 = vector.shape_cast %3 : vector<1x37x256xf32> to vector<37x256xf32>
    %cst = arith.constant dense<0.000000e+00> : vector<9x256xf32>
    %5 = tpu.matmul %1, %4, %cst {dimension_numbers = #tpu.dot_dimension_numbers<[1], [0], [0], [1], [0, 0, 1, 1], [], []>} : vector<9x37xf32>, vector<37x256xf32>, vector<9x256xf32> -> vector<9x256xf32>
    %cst_4 = arith.constant 0.000000e+00 : f32
    %6 = vector.broadcast %cst_4 : f32 to vector<9x256xf32>
    %7 = arith.maximumf %5, %6 : vector<9x256xf32>
    %cst_5 = arith.constant dense<0.000000e+00> : vector<8x256xf32>
    %8 = tpu.matmul %2, %7, %cst_5 {dimension_numbers = #tpu.dot_dimension_numbers<[1], [0], [0], [1], [0, 0, 1, 1], [], []>} : vector<8x9xf32>, vector<9x256xf32>, vector<8x256xf32> -> vector<8x256xf32>
    %c0_6 = arith.constant 0 : index
    %c0_7 = arith.constant 0 : index
    %c0_8 = arith.constant 0 : index
    %9 = vector.load %arg3[%c0_6, %c0_7, %c0_8] : memref<2x8x256xf32, #tpu.memory_space<vmem>>, vector<1x8x256xf32>
    %10 = vector.shape_cast %9 : vector<1x8x256xf32> to vector<8x256xf32>
    %11 = vector.shape_cast %8 : vector<8x256xf32> to vector<1x8x256xf32>
    tpu.vector_store %arg3[%c0_6, %c0_7, %c0_8], %11 {strides = array<i32>} : memref<2x8x256xf32, #tpu.memory_space<vmem>>, vector<1x8x256xf32>,
    %c1 = arith.constant 1 : index
    %c0_9 = arith.constant 0 : index
    %c0_10 = arith.constant 0 : index
    %12 = vector.load %arg1[%c1, %c0_9, %c0_10] : memref<2x37x256xf32, #tpu.memory_space<vmem>>, vector<1x37x256xf32>
    %13 = vector.shape_cast %12 : vector<1x37x256xf32> to vector<37x256xf32>
    %cst_11 = arith.constant dense<0.000000e+00> : vector<9x256xf32>
    %14 = tpu.matmul %1, %13, %cst_11 {dimension_numbers = #tpu.dot_dimension_numbers<[1], [0], [0], [1], [0, 0, 1, 1], [], []>} : vector<9x37xf32>, vector<37x256xf32>, vector<9x256xf32> -> vector<9x256xf32>
    %cst_12 = arith.constant 0.000000e+00 : f32
    %15 = vector.broadcast %cst_12 : f32 to vector<9x256xf32>
    %16 = arith.maximumf %14, %15 : vector<9x256xf32>
    %cst_13 = arith.constant dense<0.000000e+00> : vector<8x256xf32>
    %17 = tpu.matmul %2, %16, %cst_13 {dimension_numbers = #tpu.dot_dimension_numbers<[1], [0], [0], [1], [0, 0, 1, 1], [], []>} : vector<8x9xf32>, vector<9x256xf32>, vector<8x256xf32> -> vector<8x256xf32>
    %c1_14 = arith.constant 1 : index
    %c0_15 = arith.constant 0 : index
    %c0_16 = arith.constant 0 : index
    %18 = vector.load %arg3[%c1_14, %c0_15, %c0_16] : memref<2x8x256xf32, #tpu.memory_space<vmem>>, vector<1x8x256xf32>
    %19 = vector.shape_cast %18 : vector<1x8x256xf32> to vector<8x256xf32>
    %20 = vector.shape_cast %17 : vector<8x256xf32> to vector<1x8x256xf32>
    tpu.vector_store %arg3[%c1_14, %c0_15, %c0_16], %20 {strides = array<i32>} : memref<2x8x256xf32, #tpu.memory_space<vmem>>, vector<1x8x256xf32>,
    return
  }
  func.func @transform_0(%arg0: i32) -> (i32, i32, i32) {
    %c0_i32 = arith.constant 0 : i32
    %c0_i32_0 = arith.constant 0 : i32
    %c0_i32_1 = arith.constant 0 : i32
    return %arg0, %c0_i32, %c0_i32_0 : i32, i32, i32
  }
  func.func @transform_1(%arg0: i32) -> (i32, i32) {
    %c0_i32 = arith.constant 0 : i32
    %c0_i32_0 = arith.constant 0 : i32
    %c0_i32_1 = arith.constant 0 : i32
    return %c0_i32, %c0_i32_0 : i32, i32
  }
  func.func @transform_2(%arg0: i32) -> (i32, i32, i32) {
    %c0_i32 = arith.constant 0 : i32
    %c0_i32_0 = arith.constant 0 : i32
    %c0_i32_1 = arith.constant 0 : i32
    return %arg0, %c0_i32, %c0_i32_0 : i32, i32, i32
  }
}

</mosaic_0001>

<llo_original>
// kernel: combined_model_forward.1
$region0: #{combined_model_forward.1}
  #allocation0 [shape = 'u32[]', space=smem, size = 0x4, offset = 0x4, fixed_abs, tag = 'smem constant byte address 0x4 - core index']
  #allocation1 [shape = 'u32[72,128]{1,0:T(1,128)}', space=vmem, size = 0x9000, scoped, tag = 'internal scratch']
  %s0 = inlined_call_operand.vmem [shape: f32[2,37,256], index: 0, kind: input, shape index: {}]
  %s1 = inlined_call_operand.vmem [shape: f32[17,37], index: 1, kind: input, shape index: {}]
  %s2 = inlined_call_operand.vmem [shape: f32[2,8,256], index: 2, kind: output, shape index: {}]
  %s3 = sld [smem:[#allocation0]]
  $region18: #{combined_model_forward.1} parent=0
    _
  %s5 = ssub.s32 1, %s3
  %s6 = scalar_select 0, %s5, %s3
  // Predicated region
  $region2: #{combined_model_forward.1} parent=0 // pred_check
    _
  $region3: #{combined_model_forward.1} parent=0 // pred_check_branch
    %8 = sbr.rel (0) target = $region5
  $region4: #{combined_model_forward.1} parent=0 // pred_region
    _
  $region5: #{combined_model_forward.1} parent=0 // pred_fallthru
    _
  // Predicated region
  $region6: #{combined_model_forward.1} parent=0 // pred_check
    _
  $region7: #{combined_model_forward.1} parent=0 // pred_check_branch
    %10 = sbr.rel (0) target = $region9
  $region8: #{combined_model_forward.1} parent=0 // pred_region
    _
  $region9: #{combined_model_forward.1} parent=0 // pred_fallthru
    _
  %v11 = vld [vmem:[%s1] sm:$0xff]
  %v12 = vld [vmem:[%s1 + $0x8] sm:$0xff]
  %v13 = vld [vmem:[%s1 + $0x10] sm:$0x1]
  %v14 = vld [vmem:[%s0] sm:$0xff]
  %v15 = vld [vmem:[%s0 + $0x8] sm:$0xff]
  %v16 = vld [vmem:[%s0 + $0x10] sm:$0xff]
  %v17 = vld [vmem:[%s0 + $0x18] sm:$0xff]
  %v18 = vld [vmem:[%s0 + $0x20] sm:$0xff]
  %v19 = vld [vmem:[%s0 + $0x28] sm:$0xff]
  %v20 = vld [vmem:[%s0 + $0x30] sm:$0xff]
  %v21 = vld [vmem:[%s0 + $0x38] sm:$0xff]
  %v22 = vld [vmem:[%s0 + $0x40] sm:$0x1f]
  %v23 = vld [vmem:[%s0 + $0x48] sm:$0x1f]
  %vm24 = vcmask 302080
  %v26 = vsel %vm24, %v11, 0
  %v29 = vsel %vm24, %v12, 0
  %vm31 = vcmask 1044480
  %v33 = vsel %vm31, %v22, 0
  %v36 = vsel %vm31, %v23, 0
  %38 = vmatpush.msra.mxu0 0.0
  %39 = vmatpush.msra.mxu0 0.0
  %40 = vmatpush.msra.mxu0 0.0
  %41 = vmatpush.msra.mxu0 0.0
  %42 = vmatpush.msra.mxu0 0.0
  %43 = vmatpush.msra.mxu0 0.0
  %44 = vmatpush.msra.mxu0 0.0
  %45 = vmatpush.msra.mxu0 0.0
  %46 = vmatpush.msra.mxu0 0.0
  %47 = vmatpush.msra.mxu0 0.0
  %48 = vmatpush.msra.mxu0 0.0
  %49 = vmatpush.msra.mxu0 %v33
  %50 = vmatpush.msra.mxu0 %v20
  %51 = vmatpush.msra.mxu0 %v18
  %52 = vmatpush.msra.mxu0 %v16
  %53 = vmatpush.msra.mxu0 %v14
  %54 = vmatmul.f32.gmra.mxu0 %v26
  %v55 = vpop.f32.mrf.mxu0
  %v56 = vadd.f32 0.0, %v55
  %57 = vmatmul.f32.gmra.mxu0 %v29
  %v58 = vpop.f32.mrf.mxu0
  %v59 = vadd.f32 0.0, %v58
  %60 = vdwg.mxu0
  %61 = vmatpush.msra.mxu0 0.0
  %62 = vmatpush.msra.mxu0 0.0
  %63 = vmatpush.msra.mxu0 0.0
  %64 = vmatpush.msra.mxu0 0.0
  %65 = vmatpush.msra.mxu0 0.0
  %66 = vmatpush.msra.mxu0 0.0
  %67 = vmatpush.msra.mxu0 0.0
  %68 = vmatpush.msra.mxu0 0.0
  %69 = vmatpush.msra.mxu0 0.0
  %70 = vmatpush.msra.mxu0 0.0
  %71 = vmatpush.msra.mxu0 0.0
  %72 = vmatpush.msra.mxu0 %v36
  %73 = vmatpush.msra.mxu0 %v21
  %74 = vmatpush.msra.mxu0 %v19
  %75 = vmatpush.msra.mxu0 %v17
  %76 = vmatpush.msra.mxu0 %v15
  %77 = vmatmul.f32.gmra.mxu0 %v26
  %v78 = vpop.f32.mrf.mxu0
  %v79 = vadd.f32 0.0, %v78
  %80 = vmatmul.f32.gmra.mxu0 %v29
  %v81 = vpop.f32.mrf.mxu0
  %v82 = vadd.f32 0.0, %v81
  %83 = vdwg.mxu0
  %v84 = vmax.f32 %v56, 0.0
  %v85 = vmax.f32 %v79, 0.0
  %v86 = vmax.f32 %v59, 0.0
  %v87 = vmax.f32 %v82, 0.0
  %vm89 = vcmask 1046528
  %v90 = vrot.slane %v12, 1
  %v91 = vrot.slane %v13, 1
  %v92 = vsel %vm89, %v90, %v91
  %vm93 = vcmask 72704
  %v94 = vsel %vm93, %v92, 0
  %vm96 = vcmask 1040384
  %v98 = vsel %vm96, %v86, 0
  %v101 = vsel %vm96, %v87, 0
  %103 = vmatpush.msra.mxu0 0.0
  %104 = vmatpush.msra.mxu0 0.0
  %105 = vmatpush.msra.mxu0 0.0
  %106 = vmatpush.msra.mxu0 0.0
  %107 = vmatpush.msra.mxu0 0.0
  %108 = vmatpush.msra.mxu0 0.0
  %109 = vmatpush.msra.mxu0 0.0
  %110 = vmatpush.msra.mxu0 0.0
  %111 = vmatpush.msra.mxu0 0.0
  %112 = vmatpush.msra.mxu0 0.0
  %113 = vmatpush.msra.mxu0 0.0
  %114 = vmatpush.msra.mxu0 0.0
  %115 = vmatpush.msra.mxu0 0.0
  %116 = vmatpush.msra.mxu0 0.0
  %117 = vmatpush.msra.mxu0 %v98
  %118 = vmatpush.msra.mxu0 %v84
  %119 = vmatmul.f32.gmra.mxu0 %v94
  %v120 = vpop.f32.mrf.mxu0
  %v121 = vadd.f32 0.0, %v120
  %122 = vdwg.mxu0
  %123 = vmatpush.msra.mxu0 0.0
  %124 = vmatpush.msra.mxu0 0.0
  %125 = vmatpush.msra.mxu0 0.0
  %126 = vmatpush.msra.mxu0 0.0
  %127 = vmatpush.msra.mxu0 0.0
  %128 = vmatpush.msra.mxu0 0.0
  %129 = vmatpush.msra.mxu0 0.0
  %130 = vmatpush.msra.mxu0 0.0
  %131 = vmatpush.msra.mxu0 0.0
  %132 = vmatpush.msra.mxu0 0.0
  %133 = vmatpush.msra.mxu0 0.0
  %134 = vmatpush.msra.mxu0 0.0
  %135 = vmatpush.msra.mxu0 0.0
  %136 = vmatpush.msra.mxu0 0.0
  %137 = vmatpush.msra.mxu0 %v101
  %138 = vmatpush.msra.mxu0 %v85
  %139 = vmatmul.f32.gmra.mxu0 %v94
  %v140 = vpop.f32.mrf.mxu0
  %v141 = vadd.f32 0.0, %v140
  %142 = vdwg.mxu0
  %143 = vst [vmem:[%s2] sm:$0xff] %v121
  %144 = vst [vmem:[%s2 + $0x8] sm:$0xff] %v141
  %s145 = scalar_lea.vmem %s0, 80
  %v146 = vld [vmem:[%s145] sm:$0xff]
  %v147 = vld [vmem:[%s145 + $0x8] sm:$0xff]
  %v148 = vld [vmem:[%s145 + $0x10] sm:$0xff]
  %v149 = vld [vmem:[%s145 + $0x18] sm:$0xff]
  %v150 = vld [vmem:[%s145 + $0x20] sm:$0xff]
  %v151 = vld [vmem:[%s145 + $0x28] sm:$0xff]
  %v152 = vld [vmem:[%s145 + $0x30] sm:$0xff]
  %v153 = vld [vmem:[%s145 + $0x38] sm:$0xff]
  %v154 = vld [vmem:[%s145 + $0x40] sm:$0x1f]
  %v155 = vld [vmem:[%s145 + $0x48] sm:$0x1f]
  %v157 = vsel %vm31, %v154, 0
  %v160 = vsel %vm31, %v155, 0
  %162 = vmatpush.msra.mxu0 0.0
  %163 = vmatpush.msra.mxu0 0.0
  %164 = vmatpush.msra.mxu0 0.0
  %165 = vmatpush.msra.mxu0 0.0
  %166 = vmatpush.msra.mxu0 0.0
  %167 = vmatpush.msra.mxu0 0.0
  %168 = vmatpush.msra.mxu0 0.0
  %169 = vmatpush.msra.mxu0 0.0
  %170 = vmatpush.msra.mxu0 0.0
  %171 = vmatpush.msra.mxu0 0.0
  %172 = vmatpush.msra.mxu0 0.0
  %173 = vmatpush.msra.mxu0 %v157
  %174 = vmatpush.msra.mxu0 %v152
  %175 = vmatpush.msra.mxu0 %v150
  %176 = vmatpush.msra.mxu0 %v148
  %177 = vmatpush.msra.mxu0 %v146
  %178 = vmatmul.f32.gmra.mxu0 %v26
  %v179 = vpop.f32.mrf.mxu0
  %v180 = vadd.f32 0.0, %v179
  %181 = vmatmul.f32.gmra.mxu0 %v29
  %v182 = vpop.f32.mrf.mxu0
  %v183 = vadd.f32 0.0, %v182
  %184 = vdwg.mxu0
  %185 = vmatpush.msra.mxu0 0.0
  %186 = vmatpush.msra.mxu0 0.0
  %187 = vmatpush.msra.mxu0 0.0
  %188 = vmatpush.msra.mxu0 0.0
  %189 = vmatpush.msra.mxu0 0.0
  %190 = vmatpush.msra.mxu0 0.0
  %191 = vmatpush.msra.mxu0 0.0
  %192 = vmatpush.msra.mxu0 0.0
  %193 = vmatpush.msra.mxu0 0.0
  %194 = vmatpush.msra.mxu0 0.0
  %195 = vmatpush.msra.mxu0 0.0
  %196 = vmatpush.msra.mxu0 %v160
  %197 = vmatpush.msra.mxu0 %v153
  %198 = vmatpush.msra.mxu0 %v151
  %199 = vmatpush.msra.mxu0 %v149
  %200 = vmatpush.msra.mxu0 %v147
  %201 = vmatmul.f32.gmra.mxu0 %v26
  %v202 = vpop.f32.mrf.mxu0
  %v203 = vadd.f32 0.0, %v202
  %204 = vmatmul.f32.gmra.mxu0 %v29
  %v205 = vpop.f32.mrf.mxu0
  %v206 = vadd.f32 0.0, %v205
  %207 = vdwg.mxu0
  %v208 = vmax.f32 %v180, 0.0
  %v209 = vmax.f32 %v203, 0.0
  %v210 = vmax.f32 %v183, 0.0
  %v211 = vmax.f32 %v206, 0.0
  %v213 = vsel %vm96, %v210, 0
  %v216 = vsel %vm96, %v211, 0
  %218 = vmatpush.msra.mxu0 0.0
  %219 = vmatpush.msra.mxu0 0.0
  %220 = vmatpush.msra.mxu0 0.0
  %221 = vmatpush.msra.mxu0 0.0
  %222 = vmatpush.msra.mxu0 0.0
  %223 = vmatpush.msra.mxu0 0.0
  %224 = vmatpush.msra.mxu0 0.0
  %225 = vmatpush.msra.mxu0 0.0
  %226 = vmatpush.msra.mxu0 0.0
  %227 = vmatpush.msra.mxu0 0.0
  %228 = vmatpush.msra.mxu0 0.0
  %229 = vmatpush.msra.mxu0 0.0
  %230 = vmatpush.msra.mxu0 0.0
  %231 = vmatpush.msra.mxu0 0.0
  %232 = vmatpush.msra.mxu0 %v213
  %233 = vmatpush.msra.mxu0 %v208
  %234 = vmatmul.f32.gmra.mxu0 %v94
  %v235 = vpop.f32.mrf.mxu0
  %v236 = vadd.f32 0.0, %v235
  %237 = vdwg.mxu0
  %238 = vmatpush.msra.mxu0 0.0
  %239 = vmatpush.msra.mxu0 0.0
  %240 = vmatpush.msra.mxu0 0.0
  %241 = vmatpush.msra.mxu0 0.0
  %242 = vmatpush.msra.mxu0 0.0
  %243 = vmatpush.msra.mxu0 0.0
  %244 = vmatpush.msra.mxu0 0.0
  %245 = vmatpush.msra.mxu0 0.0
  %246 = vmatpush.msra.mxu0 0.0
  %247 = vmatpush.msra.mxu0 0.0
  %248 = vmatpush.msra.mxu0 0.0
  %249 = vmatpush.msra.mxu0 0.0
  %250 = vmatpush.msra.mxu0 0.0
  %251 = vmatpush.msra.mxu0 0.0
  %252 = vmatpush.msra.mxu0 %v216
  %253 = vmatpush.msra.mxu0 %v209
  %254 = vmatmul.f32.gmra.mxu0 %v94
  %v255 = vpop.f32.mrf.mxu0
  %v256 = vadd.f32 0.0, %v255
  %257 = vdwg.mxu0
  %s258 = scalar_lea.vmem %s2, 16
  %259 = vst [vmem:[%s258] sm:$0xff] %v236
  %260 = vst [vmem:[%s258 + $0x8] sm:$0xff] %v256
  // Predicated region
  $region10: #{combined_model_forward.1} parent=0 // pred_check
    _
  $region11: #{combined_model_forward.1} parent=0 // pred_check_branch
    %262 = sbr.rel (0) target = $region13
  $region12: #{combined_model_forward.1} parent=0 // pred_region
    _
  $region13: #{combined_model_forward.1} parent=0 // pred_fallthru
    _
  // Predicated region
  $region14: #{combined_model_forward.1} parent=0 // pred_check
    _
  $region15: #{combined_model_forward.1} parent=0 // pred_check_branch
    %264 = sbr.rel (0) target = $region17
  $region16: #{combined_model_forward.1} parent=0 // pred_region
    _
  $region17: #{combined_model_forward.1} parent=0 // pred_fallthru
    _

</llo_original>
